<compile_context>
chip_gen: v6e
topology: v6e:2x2x1
jax: 0.10.0
libtpu: 0.0.40
codegen_flags: <defaults>
</compile_context>

<pallas_src>
import functools

import numpy as np
import jax
import jax.numpy as jnp
from jax.experimental import pallas as pl
from jax.experimental.pallas import tpu as pltpu

_EPS = 1e-5     # PyTorch LayerNorm default
_LEAK = 0.01    # PyTorch LeakyReLU default


def _ln(t, g, b):
    mu = jnp.mean(t, axis=-1, keepdims=True)
    var = jnp.mean((t - mu) ** 2, axis=-1, keepdims=True)
    return (t - mu) * jax.lax.rsqrt(var + _EPS) * g + b


# ------------------------ kernel 1: node-path prologue ---------------------- #

def _node_pre_kernel(x_ref, m_ref, g_ref, b_ref, wqkv_ref, bqkv_ref,
                     xn_ref, q_ref, k_ref, v_ref):
    x = x_ref[...]                                        # (tr, D)
    xn = _ln(x, g_ref[...], b_ref[...])
    xn_ref[...] = xn                                      # un-masked (for residual)
    h = jnp.dot(xn, wqkv_ref[...], preferred_element_type=jnp.float32)
    h = (h + bqkv_ref[...]) * m_ref[...]                  # mask after projection
    d = q_ref.shape[-1]
    q_ref[...] = h[:, :d]
    k_ref[...] = h[:, d:2 * d]
    v_ref[...] = h[:, 2 * d:]


def _row_tile(r, cap=1024):
    if r <= cap:
        return r
    best = 0
    for t in range(8, cap + 1, 8):
        if r % t == 0:
            best = t
    return best if best else r


def node_pre(x2d, m2d, g, b, wqkv, bqkv):
    r, d = x2d.shape
    tr = _row_tile(r)
    row = lambda i: (i, 0)
    full = lambda i: (0, 0)
    return pl.pallas_call(
        _node_pre_kernel,
        grid=(r // tr,),
        in_specs=[
            pl.BlockSpec((tr, d), row),
            pl.BlockSpec((tr, 1), row),
            pl.BlockSpec((1, d), full),
            pl.BlockSpec((1, d), full),
            pl.BlockSpec((d, 3 * d), full),
            pl.BlockSpec((1, 3 * d), full),
        ],
        out_specs=[
            pl.BlockSpec((tr, d), row),
            pl.BlockSpec((tr, d), row),
            pl.BlockSpec((tr, d), row),
            pl.BlockSpec((tr, d), row),
        ],
        out_shape=(
            jax.ShapeDtypeStruct((r, d), jnp.float32),
            jax.ShapeDtypeStruct((r, d), jnp.float32),
            jax.ShapeDtypeStruct((r, d), jnp.float32),
            jax.ShapeDtypeStruct((r, d), jnp.float32),
        ),
        compiler_params=pltpu.CompilerParams(
            dimension_semantics=("parallel",),
            vmem_limit_bytes=32 * 1024 * 1024,
        ),
    )(x2d, m2d, g, b, wqkv, bqkv)


# ----------------- kernel 2: fused edge path + attention + epilogues -------- #

def _fused_block_kernel(e_ref, q_ref, k_ref, v_ref, xn_ref, mq_ref, mk_ref,
                        g_ei_ref, b_ei_ref,
                        w_em_ref, b_em_ref, w_ea_ref, b_ea_ref,
                        w_eo_ref, b_eo_ref, g_oe_ref, b_oe_ref,
                        w_me1_ref, b_me1_ref, w_me2_ref, b_me2_ref,
                        w_xo_ref, b_xo_ref, g_ox_ref, b_ox_ref,
                        w_mx1_ref, b_mx1_ref, w_mx2_ref, b_mx2_ref,
                        e_out_ref, x_out_ref, *, scale):
    e = e_ref[0]                       # (tq, N, D)
    q = q_ref[0]                       # (tq, D)   node-masked
    k = k_ref[0]                       # (N, D)    node-masked
    v = v_ref[0]                       # (N, D)    node-masked
    xn = xn_ref[0]                     # (tq, D)   un-masked (residual)
    mq = mq_ref[0]                     # (tq, 1)
    mk = mk_ref[0]                     # (N, 1)
    tq, n, d = e.shape

    mi = mq[:, None, :]                # (tq, 1, 1)
    mj = mk[None, :, :]                # (1, N, 1)
    mij = mi * mj                      # (tq, N, 1)

    # ---- ln_in_e (kept resident for residual) ----
    en = _ln(e, g_ei_ref[...], b_ei_ref[...])
    en2 = en.reshape(tq * n, d)

    # ---- edge modulation projections ----
    e1 = jnp.dot(en2, w_em_ref[...], preferred_element_type=jnp.float32) + b_em_ref[...]
    e2 = jnp.dot(en2, w_ea_ref[...], preferred_element_type=jnp.float32) + b_ea_ref[...]
    e1 = e1.reshape(tq, n, d) * mij
    e2 = e2.reshape(tq, n, d) * mij

    # ---- per-(head,channel) attention scores ----
    y = (q[:, None, :] * k[None, :, :]) * scale
    y = y * (e1 + 1.0) + e2                               # (tq, N, D)

    # ---- edge epilogue: e_out proj + residual + ln_out_e + mlp_e + residual ----
    e_mha = jnp.dot(y.reshape(tq * n, d), w_eo_ref[...],
                    preferred_element_type=jnp.float32) + b_eo_ref[...]
    er = en + e_mha.reshape(tq, n, d) * mij
    e_ln2 = _ln(er, g_oe_ref[...], b_oe_ref[...]).reshape(tq * n, d)
    he = jnp.dot(e_ln2, w_me1_ref[...], preferred_element_type=jnp.float32) + b_me1_ref[...]
    he = jnp.where(he > 0, he, _LEAK * he)
    e_mlp = jnp.dot(he, w_me2_ref[...], preferred_element_type=jnp.float32) + b_me2_ref[...]
    e_out_ref[0] = er + e_mlp.reshape(tq, n, d) * mij

    # ---- masked per-channel softmax over keys (axis=1) ----
    neg = jnp.finfo(jnp.float32).min
    ym = jnp.where(mj > 0, y, neg)
    ymax = jnp.max(ym, axis=1, keepdims=True)
    ex = jnp.exp(ym - ymax) * mj                          # {0,1} mask-multiply, no select
    denom = jnp.sum(ex, axis=1, keepdims=True)            # (tq, 1, D)
    inv = pl.reciprocal(jnp.maximum(denom, 1e-30), approx=False)  # EUP, denom guard
    wv = jnp.sum(ex * v[None, :, :], axis=1) * inv.reshape(tq, d)

    # ---- node epilogue: x_out proj + residual + ln_out_x + mlp_x + residual ----
    x_mha = (jnp.dot(wv, w_xo_ref[...], preferred_element_type=jnp.float32)
             + b_xo_ref[...]) * mq
    xr = xn + x_mha
    x_ln = _ln(xr, g_ox_ref[...], b_ox_ref[...])
    hx = jnp.dot(x_ln, w_mx1_ref[...], preferred_element_type=jnp.float32) + b_mx1_ref[...]
    hx = jnp.where(hx > 0, hx, _LEAK * hx)
    x_mlp = jnp.dot(hx, w_mx2_ref[...], preferred_element_type=jnp.float32) + b_mx2_ref[...]
    x_out_ref[0] = xr + x_mlp * mq


def _query_tile(n, d, m, budget_bytes=20 * 1024 * 1024):
    # keep per-block VMEM bounded (v7x-safe): ~20 live (tq,N,D) f32 slabs + MLP hidden
    def est(tq):
        return 4 * tq * n * (20 * d + 2 * m)
    cands = sorted({n} | {t for t in range(8, n, 8) if n % t == 0}, reverse=True)
    for tq in cands:
        if est(tq) <= budget_bytes:
            return tq
    return cands[-1]


def fused_graph_block(p, e, q, k, v, xn, x_mask, scale, tq):
    B, N, _, D = e.shape
    M = p["mlp_e"][0].shape[1]

    eblk = lambda b, i: (b, i, 0, 0)
    qblk = lambda b, i: (b, i, 0)
    kblk = lambda b, i: (b, 0, 0)
    wfull = lambda b, i: (0, 0)
    vec = lambda a: a.reshape(1, -1)

    flops = int(2 * B * N * N * D * (3 * D + 2 * M) + 2 * B * N * D * (D + 2 * M)
                + 40 * B * N * N * D)
    transc = int(B * N * N * D + 4 * B * N * N + 4 * B * N)
    bytes_acc = int(4 * (2 * B * N * N * D + 7 * B * N * D))

    e_final, x_final = pl.pallas_call(
        functools.partial(_fused_block_kernel, scale=scale),
        grid=(B, N // tq),
        in_specs=[
            pl.BlockSpec((1, tq, N, D), eblk),        # e
            pl.BlockSpec((1, tq, D), qblk),           # q   (query rows)
            pl.BlockSpec((1, N, D), kblk),            # k   (all keys)
            pl.BlockSpec((1, N, D), kblk),            # v
            pl.BlockSpec((1, tq, D), qblk),           # xn  (query rows)
            pl.BlockSpec((1, tq, 1), qblk),           # node mask (query rows)
            pl.BlockSpec((1, N, 1), kblk),            # node mask (keys)
            pl.BlockSpec((1, D), wfull), pl.BlockSpec((1, D), wfull),   # ln_in_e
            pl.BlockSpec((D, D), wfull), pl.BlockSpec((1, D), wfull),   # e_mul
            pl.BlockSpec((D, D), wfull), pl.BlockSpec((1, D), wfull),   # e_add
            pl.BlockSpec((D, D), wfull), pl.BlockSpec((1, D), wfull),   # e_out
            pl.BlockSpec((1, D), wfull), pl.BlockSpec((1, D), wfull),   # ln_out_e
            pl.BlockSpec((D, M), wfull), pl.BlockSpec((1, M), wfull),   # mlp_e l1
            pl.BlockSpec((M, D), wfull), pl.BlockSpec((1, D), wfull),   # mlp_e l2
            pl.BlockSpec((D, D), wfull), pl.BlockSpec((1, D), wfull),   # x_out
            pl.BlockSpec((1, D), wfull), pl.BlockSpec((1, D), wfull),   # ln_out_x
            pl.BlockSpec((D, M), wfull), pl.BlockSpec((1, M), wfull),   # mlp_x l1
            pl.BlockSpec((M, D), wfull), pl.BlockSpec((1, D), wfull),   # mlp_x l2
        ],
        out_specs=[
            pl.BlockSpec((1, tq, N, D), eblk),        # e_final
            pl.BlockSpec((1, tq, D), qblk),           # x_final
        ],
        out_shape=(
            jax.ShapeDtypeStruct((B, N, N, D), jnp.float32),
            jax.ShapeDtypeStruct((B, N, D), jnp.float32),
        ),
        compiler_params=pltpu.CompilerParams(
            dimension_semantics=("parallel", "parallel"),
            vmem_limit_bytes=32 * 1024 * 1024,
        ),
        cost_estimate=pl.CostEstimate(
            flops=flops, transcendentals=transc, bytes_accessed=bytes_acc),
    )(
        e, q, k, v, xn, x_mask, x_mask,
        vec(p["ln_in_e"][0]), vec(p["ln_in_e"][1]),
        p["e_mul"][0], vec(p["e_mul"][1]),
        p["e_add"][0], vec(p["e_add"][1]),
        p["e_out"][0], vec(p["e_out"][1]),
        vec(p["ln_out_e"][0]), vec(p["ln_out_e"][1]),
        p["mlp_e"][0], vec(p["mlp_e"][1]),
        p["mlp_e"][2], vec(p["mlp_e"][3]),
        p["x_out"][0], vec(p["x_out"][1]),
        vec(p["ln_out_x"][0]), vec(p["ln_out_x"][1]),
        p["mlp_x"][0], vec(p["mlp_x"][1]),
        p["mlp_x"][2], vec(p["mlp_x"][3]),
    )
    return x_final, e_final


# ------------------------------ layer forward ------------------------------ #

def graph_transformer_layer(p, x, e, node_mask, num_heads):
    B, N, D = x.shape
    M = p["mlp_x"][0].shape[1]
    x_mask = node_mask[:, :, None].astype(jnp.float32)    # (B, N, 1)

    # node prologue: LN_in_x + concatenated QKV projection (one HBM pass over x)
    R = B * N
    w_qkv = jnp.concatenate([p["q"][0], p["k"][0], p["v"][0]], axis=1)
    b_qkv = jnp.concatenate([p["q"][1], p["k"][1], p["v"][1]], axis=0)
    xn2, q2, k2, v2 = node_pre(
        x.reshape(R, D), x_mask.reshape(R, 1),
        p["ln_in_x"][0].reshape(1, D), p["ln_in_x"][1].reshape(1, D),
        w_qkv, b_qkv.reshape(1, 3 * D))
    xn = xn2.reshape(B, N, D)
    q = q2.reshape(B, N, D)
    k = k2.reshape(B, N, D)
    v = v2.reshape(B, N, D)

    scale = 1.0 / float(np.sqrt(D // num_heads))
    tq = _query_tile(N, D, M)
    return fused_graph_block(p, e, q, k, v, xn, x_mask, scale, tq)


# --------------------------- params (deterministic) ------------------------ #

def init_params(key, d, m):
    keys = iter(jax.random.split(key, 64))

    def lin(din, dout):
        w = jax.random.normal(next(keys), (din, dout), jnp.float32) / np.sqrt(din)
        b = 0.01 * jax.random.normal(next(keys), (dout,), jnp.float32)
        return (w, b)

    def ln():
        g = 1.0 + 0.1 * jax.random.normal(next(keys), (d,), jnp.float32)
        b = 0.1 * jax.random.normal(next(keys), (d,), jnp.float32)
        return (g, b)

    return {
        "ln_in_x": ln(), "ln_in_e": ln(), "ln_out_x": ln(), "ln_out_e": ln(),
        "q": lin(d, d), "k": lin(d, d), "v": lin(d, d),
        "e_mul": lin(d, d), "e_add": lin(d, d),
        "x_out": lin(d, d), "e_out": lin(d, d),
        "mlp_x": lin(d, m) + lin(m, d),
        "mlp_e": lin(d, m) + lin(m, d),
    }


# ------------------------- pure-JAX reference check ------------------------ #

def reference(p, x, e, node_mask, num_heads):
    B, N, D = x.shape
    df = D // num_heads
    x_mask = node_mask[:, :, None]
    e_mask1 = x_mask[:, :, None, :]
    e_mask2 = x_mask[:, None, :, :]

    def ln(t, g, b):
        mu = t.mean(-1, keepdims=True)
        var = ((t - mu) ** 2).mean(-1, keepdims=True)
        return (t - mu) / jnp.sqrt(var + 1e-5) * g + b

    def lin(t, w, b):
        return t @ w + b

    def mlp_ref(t, w1, b1, w2, b2):
        h = t @ w1 + b1
        h = jnp.where(h > 0, h, 0.01 * h)
        return h @ w2 + b2

    xn = ln(x, *p["ln_in_x"])
    en = ln(e, *p["ln_in_e"])

    Q = (lin(xn, *p["q"]) * x_mask).reshape(B, N, num_heads, df)
    K = (lin(xn, *p["k"]) * x_mask).reshape(B, N, num_heads, df)
    V = (lin(xn, *p["v"]) * x_mask).reshape(B, N, num_heads, df)
    Y = Q[:, :, None] * K[:, None] / np.sqrt(df)              # (B,N,N,H,df)
    E1 = (lin(en, *p["e_mul"]) * e_mask1 * e_mask2).reshape(B, N, N, num_heads, df)
    E2 = (lin(en, *p["e_add"]) * e_mask1 * e_mask2).reshape(B, N, N, num_heads, df)
    Y = Y * (E1 + 1.0) + E2

    e_mha = lin(Y.reshape(B, N, N, D), *p["e_out"]) * e_mask1 * e_mask2

    key_mask = x_mask[:, None, :, :, None]                    # (B,1,N,1,1)
    Ym = jnp.where(key_mask > 0, Y, -jnp.inf)
    attn = jax.nn.softmax(Ym, axis=2)
    attn = jnp.where(key_mask > 0, attn, 0.0)
    wV = (attn * V[:, None]).sum(axis=2).reshape(B, N, D)
    x_mha = lin(wV, *p["x_out"]) * x_mask

    xr = xn + x_mha
    x_final = xr + mlp_ref(ln(xr, *p["ln_out_x"]), *p["mlp_x"]) * x_mask
    er = en + e_mha
    e_final = er + mlp_ref(ln(er, *p["ln_out_e"]), *p["mlp_e"]) * e_mask1 * e_mask2
    return x_final, e_final


# ---------------------------------- main ----------------------------------- #

if __name__ == "__main__":
    B, N, D, H, M = 2, 8, 32, 4, 64
    key = jax.random.PRNGKey(0)
    kx, ke, kp = jax.random.split(key, 3)

    x = jax.random.normal(kx, (B, N, D), jnp.float32)
    e = jax.random.normal(ke, (B, N, N, D), jnp.float32)
    # every graph has at least one real node
    node_mask = (jnp.arange(N)[None, :] < jnp.array([6, 8])[:, None]).astype(jnp.float32)

    params = init_params(kp, D, M)

    x_out, e_out = graph_transformer_layer(params, x, e, node_mask, H)
    jax.block_until_ready((x_out, e_out))

    x_ref, e_ref = reference(params, x, e, node_mask, H)
    assert np.allclose(np.asarray(x_out), np.asarray(x_ref), atol=1e-4, rtol=1e-4)
    assert np.allclose(np.asarray(e_out), np.asarray(e_ref), atol=1e-4, rtol=1e-4)

    print("KERNEL_OK")
</pallas_src>

<mosaic_0001>
module attributes {stable_mosaic.version = 11 : i64} {
  func.func @_node_pre_kernel(%arg0: i32, %arg1: memref<16x32xf32, #tpu.memory_space<vmem>>, %arg2: memref<16x1xf32, #tpu.memory_space<vmem>>, %arg3: memref<1x32xf32, #tpu.memory_space<vmem>>, %arg4: memref<1x32xf32, #tpu.memory_space<vmem>>, %arg5: memref<32x96xf32, #tpu.memory_space<vmem>>, %arg6: memref<1x96xf32, #tpu.memory_space<vmem>>, %arg7: memref<16x32xf32, #tpu.memory_space<vmem>>, %arg8: memref<16x32xf32, #tpu.memory_space<vmem>>, %arg9: memref<16x32xf32, #tpu.memory_space<vmem>>, %arg10: memref<16x32xf32, #tpu.memory_space<vmem>>) attributes {dimension_semantics = [#tpu.dimension_semantics<parallel>], iteration_bounds = array<i64: 1>, scalar_prefetch = 0 : i64, scratch_operands = 0 : i64, tpu.core_type = #tpu.core_type<tc>, window_params = [{transform_indices = @transform_0, window_bounds = array<i64: 16, 32>}, {transform_indices = @transform_1, window_bounds = array<i64: 16, 1>}, {pipeline_mode = #tpu.pipeline_mode<synchronous>, transform_indices = @transform_2, window_bounds = array<i64: 1, 32>}, {pipeline_mode = #tpu.pipeline_mode<synchronous>, transform_indices = @transform_3, window_bounds = array<i64: 1, 32>}, {pipeline_mode = #tpu.pipeline_mode<synchronous>, transform_indices = @transform_4, window_bounds = array<i64: 32, 96>}, {pipeline_mode = #tpu.pipeline_mode<synchronous>, transform_indices = @transform_5, window_bounds = array<i64: 1, 96>}, {transform_indices = @transform_6, window_bounds = array<i64: 16, 32>}, {transform_indices = @transform_7, window_bounds = array<i64: 16, 32>}, {transform_indices = @transform_8, window_bounds = array<i64: 16, 32>}, {transform_indices = @transform_9, window_bounds = array<i64: 16, 32>}]} {
    %c0 = arith.constant 0 : index
    %c0_0 = arith.constant 0 : index
    %0 = vector.load %arg1[%c0, %c0_0] : memref<16x32xf32, #tpu.memory_space<vmem>>, vector<16x32xf32>
    %c0_1 = arith.constant 0 : index
    %c0_2 = arith.constant 0 : index
    %1 = vector.load %arg3[%c0_1, %c0_2] : memref<1x32xf32, #tpu.memory_space<vmem>>, vector<1x32xf32>
    %c0_3 = arith.constant 0 : index
    %c0_4 = arith.constant 0 : index
    %2 = vector.load %arg4[%c0_3, %c0_4] : memref<1x32xf32, #tpu.memory_space<vmem>>, vector<1x32xf32>
    %cst = arith.constant dense<0.000000e+00> : vector<16xf32>
    %3 = vector.multi_reduction <add>, %0, %cst [1] : vector<16x32xf32> to vector<16xf32>
    %4 = vector.shape_cast %3 : vector<16xf32> to vector<16x1xf32>
    %cst_5 = arith.constant 3.200000e+01 : f32
    %5 = vector.broadcast %cst_5 : f32 to vector<16x1xf32>
    %6 = arith.divf %4, %5 : vector<16x1xf32>
    %7 = vector.broadcast %6 : vector<16x1xf32> to vector<16x32xf32>
    %8 = arith.subf %0, %7 : vector<16x32xf32>
    %9 = arith.mulf %8, %8 : vector<16x32xf32>
    %cst_6 = arith.constant dense<0.000000e+00> : vector<16xf32>
    %10 = vector.multi_reduction <add>, %9, %cst_6 [1] : vector<16x32xf32> to vector<16xf32>
    %11 = vector.shape_cast %10 : vector<16xf32> to vector<16x1xf32>
    %cst_7 = arith.constant 3.200000e+01 : f32
    %12 = vector.broadcast %cst_7 : f32 to vector<16x1xf32>
    %13 = arith.divf %11, %12 : vector<16x1xf32>
    %14 = vector.broadcast %6 : vector<16x1xf32> to vector<16x32xf32>
    %15 = arith.subf %0, %14 : vector<16x32xf32>
    %cst_8 = arith.constant 9.99999974E-6 : f32
    %16 = vector.broadcast %cst_8 : f32 to vector<16x1xf32>
    %17 = arith.addf %13, %16 : vector<16x1xf32>
    %18 = math.rsqrt %17 : vector<16x1xf32>
    %19 = vector.broadcast %18 : vector<16x1xf32> to vector<16x32xf32>
    %20 = arith.mulf %15, %19 : vector<16x32xf32>
    %21 = vector.broadcast %1 : vector<1x32xf32> to vector<16x32xf32>
    %22 = arith.mulf %20, %21 : vector<16x32xf32>
    %23 = vector.broadcast %2 : vector<1x32xf32> to vector<16x32xf32>
    %24 = arith.addf %22, %23 : vector<16x32xf32>
    %c0_9 = arith.constant 0 : index
    %c0_10 = arith.constant 0 : index
    %25 = vector.load %arg7[%c0_9, %c0_10] : memref<16x32xf32, #tpu.memory_space<vmem>>, vector<16x32xf32>
    tpu.vector_store %arg7[%c0_9, %c0_10], %24 {strides = array<i32>} : memref<16x32xf32, #tpu.memory_space<vmem>>, vector<16x32xf32>,
    %c0_11 = arith.constant 0 : index
    %c0_12 = arith.constant 0 : index
    %26 = vector.load %arg5[%c0_11, %c0_12] : memref<32x96xf32, #tpu.memory_space<vmem>>, vector<32x96xf32>
    %cst_13 = arith.constant dense<0.000000e+00> : vector<16x96xf32>
    %27 = tpu.matmul %24, %26, %cst_13 {dimension_numbers = #tpu.dot_dimension_numbers<[1], [0], [0], [1], [0, 0, 1, 1], [], []>} : vector<16x32xf32>, vector<32x96xf32>, vector<16x96xf32> -> vector<16x96xf32>
    %c0_14 = arith.constant 0 : index
    %c0_15 = arith.constant 0 : index
    %28 = vector.load %arg6[%c0_14, %c0_15] : memref<1x96xf32, #tpu.memory_space<vmem>>, vector<1x96xf32>
    %29 = vector.broadcast %28 : vector<1x96xf32> to vector<16x96xf32>
    %30 = arith.addf %27, %29 : vector<16x96xf32>
    %c0_16 = arith.constant 0 : index
    %c0_17 = arith.constant 0 : index
    %31 = vector.load %arg2[%c0_16, %c0_17] : memref<16x1xf32, #tpu.memory_space<vmem>>, vector<16x1xf32>
    %32 = vector.broadcast %31 : vector<16x1xf32> to vector<16x96xf32>
    %33 = arith.mulf %30, %32 : vector<16x96xf32>
    %34 = vector.extract_strided_slice %33 {offsets = [0, 0], sizes = [16, 32], strides = [1, 1]} : vector<16x96xf32> to vector<16x32xf32>
    %c0_18 = arith.constant 0 : index
    %c0_19 = arith.constant 0 : index
    %35 = vector.load %arg8[%c0_18, %c0_19] : memref<16x32xf32, #tpu.memory_space<vmem>>, vector<16x32xf32>
    tpu.vector_store %arg8[%c0_18, %c0_19], %34 {strides = array<i32>} : memref<16x32xf32, #tpu.memory_space<vmem>>, vector<16x32xf32>,
    %36 = vector.extract_strided_slice %33 {offsets = [0, 32], sizes = [16, 32], strides = [1, 1]} : vector<16x96xf32> to vector<16x32xf32>
    %c0_20 = arith.constant 0 : index
    %c0_21 = arith.constant 0 : index
    %37 = vector.load %arg9[%c0_20, %c0_21] : memref<16x32xf32, #tpu.memory_space<vmem>>, vector<16x32xf32>
    tpu.vector_store %arg9[%c0_20, %c0_21], %36 {strides = array<i32>} : memref<16x32xf32, #tpu.memory_space<vmem>>, vector<16x32xf32>,
    %38 = vector.extract_strided_slice %33 {offsets = [0, 64], sizes = [16, 32], strides = [1, 1]} : vector<16x96xf32> to vector<16x32xf32>
    %c0_22 = arith.constant 0 : index
    %c0_23 = arith.constant 0 : index
    %39 = vector.load %arg10[%c0_22, %c0_23] : memref<16x32xf32, #tpu.memory_space<vmem>>, vector<16x32xf32>
    tpu.vector_store %arg10[%c0_22, %c0_23], %38 {strides = array<i32>} : memref<16x32xf32, #tpu.memory_space<vmem>>, vector<16x32xf32>,
    return
  }
  func.func @transform_0(%arg0: i32) -> (i32, i32) {
    %c0_i32 = arith.constant 0 : i32
    %c0_i32_0 = arith.constant 0 : i32
    return %arg0, %c0_i32 : i32, i32
  }
  func.func @transform_1(%arg0: i32) -> (i32, i32) {
    %c0_i32 = arith.constant 0 : i32
    %c0_i32_0 = arith.constant 0 : i32
    return %arg0, %c0_i32 : i32, i32
  }
  func.func @transform_2(%arg0: i32) -> (i32, i32) {
    %c0_i32 = arith.constant 0 : i32
    %c0_i32_0 = arith.constant 0 : i32
    %c0_i32_1 = arith.constant 0 : i32
    return %c0_i32, %c0_i32_0 : i32, i32
  }
  func.func @transform_3(%arg0: i32) -> (i32, i32) {
    %c0_i32 = arith.constant 0 : i32
    %c0_i32_0 = arith.constant 0 : i32
    %c0_i32_1 = arith.constant 0 : i32
    return %c0_i32, %c0_i32_0 : i32, i32
  }
  func.func @transform_4(%arg0: i32) -> (i32, i32) {
    %c0_i32 = arith.constant 0 : i32
    %c0_i32_0 = arith.constant 0 : i32
    %c0_i32_1 = arith.constant 0 : i32
    return %c0_i32, %c0_i32_0 : i32, i32
  }
  func.func @transform_5(%arg0: i32) -> (i32, i32) {
    %c0_i32 = arith.constant 0 : i32
    %c0_i32_0 = arith.constant 0 : i32
    %c0_i32_1 = arith.constant 0 : i32
    return %c0_i32, %c0_i32_0 : i32, i32
  }
  func.func @transform_6(%arg0: i32) -> (i32, i32) {
    %c0_i32 = arith.constant 0 : i32
    %c0_i32_0 = arith.constant 0 : i32
    return %arg0, %c0_i32 : i32, i32
  }
  func.func @transform_7(%arg0: i32) -> (i32, i32) {
    %c0_i32 = arith.constant 0 : i32
    %c0_i32_0 = arith.constant 0 : i32
    return %arg0, %c0_i32 : i32, i32
  }
  func.func @transform_8(%arg0: i32) -> (i32, i32) {
    %c0_i32 = arith.constant 0 : i32
    %c0_i32_0 = arith.constant 0 : i32
    return %arg0, %c0_i32 : i32, i32
  }
  func.func @transform_9(%arg0: i32) -> (i32, i32) {
    %c0_i32 = arith.constant 0 : i32
    %c0_i32_0 = arith.constant 0 : i32
    return %arg0, %c0_i32 : i32, i32
  }
}

</mosaic_0001>

<llo_original>
// kernel: tpu_custom_call.1
$region0: #{tpu_custom_call.1}
  #allocation0 [shape = 'u32[]', space=smem, size = 0x4, offset = 0x4, fixed_abs, tag = 'smem constant byte address 0x4 - core index']
  #allocation1 [shape = 'u32[144,128]{1,0:T(1,128)}', space=vmem, size = 0x12000, scoped, tag = 'internal scratch']
  %s0 = inlined_call_operand.vmem [shape: f32[16,32], index: 0, kind: input, shape index: {}]
  %s1 = inlined_call_operand.vmem [shape: f32[16,1], index: 1, kind: input, shape index: {}]
  %s2 = inlined_call_operand.vmem [shape: f32[1,32], index: 2, kind: input, shape index: {}]
  %s3 = inlined_call_operand.vmem [shape: f32[1,32], index: 3, kind: input, shape index: {}]
  %s4 = inlined_call_operand.hbm [shape: f32[32,96], index: 4, kind: input, shape index: {}]
  %s5 = inlined_call_operand.vmem [shape: f32[1,96], index: 5, kind: input, shape index: {}]
  %s6 = inlined_call_operand.hbm [shape: f32[16,32], index: 6, kind: output, shape index: {0}]
  %s7 = inlined_call_operand.hbm [shape: f32[16,32], index: 7, kind: output, shape index: {1}]
  %s8 = inlined_call_operand.hbm [shape: f32[16,32], index: 8, kind: output, shape index: {2}]
  %s9 = inlined_call_operand.hbm [shape: f32[16,32], index: 9, kind: output, shape index: {3}]
  %10 = xla_tuple %s6, %s7, %s8, %s9
  %s11 = sld [smem:[#allocation0]]
  $region62: #{tpu_custom_call.1} parent=0
    _
  %s13 = ssub.s32 1, %s11
  %s14 = scalar_select 0, %s13, %s11
  $region1: #{tpu_custom_call.1} parent=0
    #allocation2 [shape = 'u8[16384]{0}', space=vmem, size = 0x4000, scoped, tag = 'input window, operand 4, single buffered']
    #allocation3 [shape = 's32[1]{0}', space=sflag, size = 0x4, scoped, tag = 'scoped memory for tpu_custom_call.1']
    #allocation4 [shape = 's32[1]{0}', space=sflag, size = 0x4, scoped, tag = 'scoped memory for tpu_custom_call.1']
    #allocation5 [shape = 'u8[8192]{0}', space=vmem, size = 0x2000, scoped, tag = 'output window, operand 0, single buffered']
    #allocation6 [shape = 'u8[8192]{0}', space=vmem, size = 0x2000, scoped, tag = 'output window, operand 1, single buffered']
    #allocation7 [shape = 's32[1]{0}', space=sflag, size = 0x4, scoped, tag = 'scoped memory for tpu_custom_call.1']
    #allocation8 [shape = 'u8[8192]{0}', space=vmem, size = 0x2000, scoped, tag = 'output window, operand 2, single buffered']
    #allocation9 [shape = 'u8[8192]{0}', space=vmem, size = 0x2000, scoped, tag = 'output window, operand 3, single buffered']
    #allocation10 [shape = 's32[1]{0}', space=sflag, size = 0x4, scoped, tag = 'scoped memory for tpu_custom_call.1']
    %15 = vsyncpa [#allocation3], 0
    %16 = vsyncpa [#allocation4], 0
    %17 = vsyncpa [#allocation7], 0
    %18 = vsyncpa [#allocation10], 0
    // Predicated region
    $region2: #{tpu_custom_call.1} parent=1 // pred_check
      _
    $region3: #{tpu_custom_call.1} parent=1 // pred_check_branch
      %20 = sbr.rel (0) target = $region5
    $region4: #{tpu_custom_call.1} parent=1 // pred_region
      _
    $region5: #{tpu_custom_call.1} parent=1 // pred_fallthru
      _
    // Predicated region
    $region6: #{tpu_custom_call.1} parent=1 // pred_check
      _
    $region7: #{tpu_custom_call.1} parent=1 // pred_check_branch
      %22 = sbr.rel (0) target = $region9
    $region8: #{tpu_custom_call.1} parent=1 // pred_region
      _
    $region9: #{tpu_custom_call.1} parent=1 // pred_fallthru
      _
    // Predicated region
    $region10: #{tpu_custom_call.1} parent=1 // pred_check
      _
    $region11: #{tpu_custom_call.1} parent=1 // pred_check_branch
      %24 = sbr.rel (0) target = $region13
    $region12: #{tpu_custom_call.1} parent=1 // pred_region
      _
    $region13: #{tpu_custom_call.1} parent=1 // pred_fallthru
      _
    // Predicated region
    $region14: #{tpu_custom_call.1} parent=1 // pred_check
      _
    $region15: #{tpu_custom_call.1} parent=1 // pred_check_branch
      %26 = sbr.rel (0) target = $region17
    $region16: #{tpu_custom_call.1} parent=1 // pred_region
      _
    $region17: #{tpu_custom_call.1} parent=1 // pred_fallthru
      _
    // Predicated region
    $region18: #{tpu_custom_call.1} parent=1 // pred_check
      _
    $region19: #{tpu_custom_call.1} parent=1 // pred_check_branch
      %28 = sbr.rel (0) target = $region21
    $region20: #{tpu_custom_call.1} parent=1 // pred_region
      %s30 = ssub.s32 512, 512
      %31 = vsyncadd [#allocation3], %s30
      %s32 = sshll.u32 [#allocation2], 4
      %s33 = int_to_ptr.vmem [resolvable:$true] %s32
      %38 = dma.hbm_to_vmem [thread:$0]  %s4, 512, %s33, [#allocation3], 128, 128, 8
    $region21: #{tpu_custom_call.1} parent=1 // pred_fallthru
      _
    // Predicated region
    $region22: #{tpu_custom_call.1} parent=1 // pred_check
      _
    $region23: #{tpu_custom_call.1} parent=1 // pred_check_branch
      %40 = sbr.rel (0) target = $region25
    $region24: #{tpu_custom_call.1} parent=1 // pred_region
      _
    $region25: #{tpu_custom_call.1} parent=1 // pred_fallthru
      _
    // Predicated region
    $region26: #{tpu_custom_call.1} parent=1 // pred_check
      _
    $region27: #{tpu_custom_call.1} parent=1 // pred_check_branch
      %42 = sbr.rel (0) target = $region29
    $region28: #{tpu_custom_call.1} parent=1 // pred_region
      %43 = dma.done [#allocation3], 512
    $region29: #{tpu_custom_call.1} parent=1 // pred_fallthru
      _
    %v44 = vld [vmem:[%s0] sm:$0xff]
    %v45 = vld [vmem:[%s0 + $0x8] sm:$0xff]
    %v46 = vld [vmem:[%s2] sm:$0x1]
    %v47 = vld [vmem:[%s3] sm:$0x1]
    %vm48 = vcmask 261120
    %v49 = vsel %vm48, %v44, 0.0
    %50 = vadd.xlane.f32.xlu0 %v49
    %v51 = vpop.xlane.xlu0 %50
    %v52 = vsel %vm48, %v45, 0.0
    %53 = vadd.xlane.f32.xlu0 %v52
    %v54 = vpop.xlane.xlu0 %53
    %v55 = vrcp.pop 32.0
    %v56 = vmul.f32 %v51, %v55
    %v57 = vmul.f32 %v54, %v55
    %v58 = vsub.f32 %v44, %v56
    %v59 = vsub.f32 %v45, %v57
    %v60 = vmul.f32 %v58, %v58
    %v61 = vmul.f32 %v59, %v59
    %v62 = vsel %vm48, %v60, 0.0
    %63 = vadd.xlane.f32.xlu0 %v62
    %v64 = vpop.xlane.xlu0 %63
    %v65 = vsel %vm48, %v61, 0.0
    %66 = vadd.xlane.f32.xlu0 %v65
    %v67 = vpop.xlane.xlu0 %66
    %v68 = vmul.f32 %v64, %v55
    %v69 = vmul.f32 %v67, %v55
    %v70 = vadd.f32 %v68, 1e-05
    %v71 = vadd.f32 %v69, 1e-05
    %v72 = vrsqrt.pop %v70
    %v73 = vrsqrt.pop %v71
    %v74 = vmul.f32 %v58, %v72
    %v75 = vmul.f32 %v59, %v73
    %v77 = vlaneseq
    %v78 = vshrl.u32 %v77, 7
    %v79 = vsub.s32 0, %v78
    %v80 = vrot.slane %v46, %v79
    %v82 = vmul.f32 %v74, %v80
    %v83 = vmul.f32 %v75, %v80
    %v85 = vlaneseq
    %v86 = vshrl.u32 %v85, 7
    %v87 = vsub.s32 0, %v86
    %v88 = vrot.slane %v47, %v87
    %v90 = vadd.f32 %v82, %v88
    %v91 = vadd.f32 %v83, %v88
    %92 = vst.msk [vmem:[#allocation5] sm:$0xff] %vm48, %v90
    %93 = vst.msk [vmem:[#allocation5 + $0x8] sm:$0xff] %vm48, %v91
    %v94 = vld [vmem:[#allocation2] sm:$0xff]
    %v95 = vld [vmem:[#allocation2 + $0x8] sm:$0xff]
    %v96 = vld [vmem:[#allocation2 + $0x10] sm:$0xff]
    %v97 = vld [vmem:[#allocation2 + $0x18] sm:$0xff]
    %v98 = vld [vmem:[%s5] sm:$0x1]
    %v100 = vlaneseq
    %v101 = vshrl.u32 %v100, 7
    %v102 = vsub.s32 0, %v101
    %v103 = vrot.slane %v98, %v102
    %v106 = vsel %vm48, %v90, 0
    %v109 = vsel %vm48, %v91, 0
    %111 = vmatprep.subr.mxu0 0.0
    %112 = vmatpush1.msra.mxu0 0.0
    %113 = vmatprep.subr.mxu0 0.0
    %114 = vmatpush1.msra.mxu0 0.0
    %115 = vmatprep.subr.mxu0 0.0
    %116 = vmatpush1.msra.mxu0 0.0
    %117 = vmatprep.subr.mxu0 0.0
    %118 = vmatpush1.msra.mxu0 0.0
    %119 = vmatprep.subr.mxu0 0.0
    %120 = vmatpush1.msra.mxu0 0.0
    %121 = vmatprep.subr.mxu0 0.0
    %122 = vmatpush1.msra.mxu0 0.0
    %123 = vmatprep.subr.mxu0 0.0
    %124 = vmatpush1.msra.mxu0 0.0
    %125 = vmatprep.subr.mxu0 0.0
    %126 = vmatpush1.msra.mxu0 0.0
    %127 = vmatprep.subr.mxu0 0.0
    %128 = vmatpush1.msra.mxu0 0.0
    %129 = vmatprep.subr.mxu0 0.0
    %130 = vmatpush1.msra.mxu0 0.0
    %131 = vmatprep.subr.mxu0 0.0
    %132 = vmatpush1.msra.mxu0 0.0
    %133 = vmatprep.subr.mxu0 0.0
    %134 = vmatpush1.msra.mxu0 0.0
    %135 = vmatprep.subr.mxu0 0.0
    %136 = vmatpush1.msra.mxu0 %v97
    %137 = vmatprep.subr.mxu0 0.0
    %138 = vmatpush1.msra.mxu0 %v96
    %139 = vmatprep.subr.mxu0 0.0
    %140 = vmatpush1.msra.mxu0 %v95
    %141 = vmatprep.subr.mxu0 0.0
    %142 = vmatpush1.msra.mxu0 %v94
    %143 = vmatprep.subr.mxu0 0.0
    %144 = vmatpush2.msra.mxu0 0.0
    %145 = vmatprep.subr.mxu0 0.0
    %146 = vmatpush2.msra.mxu0 0.0
    %147 = vmatprep.subr.mxu0 0.0
    %148 = vmatpush2.msra.mxu0 0.0
    %149 = vmatprep.subr.mxu0 0.0
    %150 = vmatpush2.msra.mxu0 0.0
    %151 = vmatprep.subr.mxu0 0.0
    %152 = vmatpush2.msra.mxu0 0.0
    %153 = vmatprep.subr.mxu0 0.0
    %154 = vmatpush2.msra.mxu0 0.0
    %155 = vmatprep.subr.mxu0 0.0
    %156 = vmatpush2.msra.mxu0 0.0
    %157 = vmatprep.subr.mxu0 0.0
    %158 = vmatpush2.msra.mxu0 0.0
    %159 = vmatprep.subr.mxu0 0.0
    %160 = vmatpush2.msra.mxu0 0.0
    %161 = vmatprep.subr.mxu0 0.0
    %162 = vmatpush2.msra.mxu0 0.0
    %163 = vmatprep.subr.mxu0 0.0
    %164 = vmatpush2.msra.mxu0 0.0
    %165 = vmatprep.subr.mxu0 0.0
    %166 = vmatpush2.msra.mxu0 0.0
    %167 = vmatprep.subr.mxu0 0.0
    %168 = vmatpush2.msra.mxu0 0.0
    %169 = vmatprep.subr.mxu0 0.0
    %170 = vmatpush2.msra.mxu0 0.0
    %171 = vmatprep.subr.mxu0 0.0
    %172 = vmatpush2.msra.mxu0 0.0
    %173 = vmatprep.subr.mxu0 0.0
    %174 = vmatpush2.msra.mxu0 0.0
    %175 = vmatprep.mubr.f32.mxu0 0.0
    %176 = vmatmul.mubr.f32.gmra.mxu0 %v106
    %v177 = vpop.f32.mrf.mxu0
    %v178 = vadd.f32 %v103, %v177
    %v179 = vpop.f32.mrf.mxu0
    %180 = vmatprep.mubr.f32.mxu0 0.0
    %181 = vmatmul.mubr.f32.gmra.mxu0 %v109
    %v182 = vpop.f32.mrf.mxu0
    %v183 = vadd.f32 %v103, %v182
    %v184 = vpop.f32.mrf.mxu0
    %185 = vdwg.mxu0
    %v186 = vld [vmem:[%s1] sm:$0xff]
    %v187 = vld [vmem:[%s1 + $0x8] sm:$0xff]
    %189 = vset.pattern.permute.xlu0 0
    %190 = vperm.xlu0 %189, %v186
    %v191 = vpop.permute.xlu0 %190
    %194 = vset.pattern.permute.xlu0 0
    %195 = vperm.xlu0 %194, %v187
    %v196 = vpop.permute.xlu0 %195
    %v198 = vmul.f32 %v178, %v191
    %v199 = vmul.f32 %v183, %v196
    %200 = vst.msk [vmem:[#allocation6] sm:$0xff] %vm48, %v198
    %201 = vst.msk [vmem:[#allocation6 + $0x8] sm:$0xff] %vm48, %v199
    %204 = vrot.lane.b32.xlu0 %v198, 96
    %v205 = vpop.permute.xlu0 %204
    %206 = vrot.lane.b32.xlu0 %v199, 96
    %v207 = vpop.permute.xlu0 %206
    %210 = vst.msk [vmem:[#allocation8] sm:$0xff] %vm48, %v205
    %211 = vst.msk [vmem:[#allocation8 + $0x8] sm:$0xff] %vm48, %v207
    %212 = vrot.lane.b32.xlu0 %v198, 64
    %v213 = vpop.permute.xlu0 %212
    %214 = vrot.lane.b32.xlu0 %v199, 64
    %v215 = vpop.permute.xlu0 %214
    %218 = vst.msk [vmem:[#allocation9] sm:$0xff] %vm48, %v213
    %219 = vst.msk [vmem:[#allocation9 + $0x8] sm:$0xff] %vm48, %v215
    // Predicated region
    $region30: #{tpu_custom_call.1} parent=1 // pred_check
      _
    $region31: #{tpu_custom_call.1} parent=1 // pred_check_branch
      %221 = sbr.rel (0) target = $region33
    $region32: #{tpu_custom_call.1} parent=1 // pred_region
      %s223 = ssub.s32 256, 256
      %224 = vsyncadd [#allocation4], %s223
      %s225 = sshll.u32 [#allocation5], 4
      %s226 = int_to_ptr.vmem [resolvable:$true] %s225
      %231 = dma.vmem_to_hbm [thread:$0]  %s226, 256, %s6, [#allocation4], 128, 128, 8
    $region33: #{tpu_custom_call.1} parent=1 // pred_fallthru
      _
    // Predicated region
    $region34: #{tpu_custom_call.1} parent=1 // pred_check
      _
    $region35: #{tpu_custom_call.1} parent=1 // pred_check_branch
      %233 = sbr.rel (0) target = $region37
    $region36: #{tpu_custom_call.1} parent=1 // pred_region
      %s235 = ssub.s32 256, 256
      %236 = vsyncadd [#allocation7], %s235
      %s237 = sshll.u32 [#allocation6], 4
      %s238 = int_to_ptr.vmem [resolvable:$true] %s237
      %243 = dma.vmem_to_hbm [thread:$0]  %s238, 256, %s7, [#allocation7], 128, 128, 8
    $region37: #{tpu_custom_call.1} parent=1 // pred_fallthru
      _
    // Predicated region
    $region38: #{tpu_custom_call.1} parent=1 // pred_check
      _
    $region39: #{tpu_custom_call.1} parent=1 // pred_check_branch
      %245 = sbr.rel (0) target = $region41
    $region40: #{tpu_custom_call.1} parent=1 // pred_region
      %s247 = ssub.s32 256, 256
      %248 = vsyncadd [#allocation7], %s247
      %s249 = sshll.u32 [#allocation8], 4
      %s250 = int_to_ptr.vmem [resolvable:$true] %s249
      %255 = dma.vmem_to_hbm [thread:$0]  %s250, 256, %s8, [#allocation7], 128, 128, 8
    $region41: #{tpu_custom_call.1} parent=1 // pred_fallthru
      _
    // Predicated region
    $region42: #{tpu_custom_call.1} parent=1 // pred_check
      _
    $region43: #{tpu_custom_call.1} parent=1 // pred_check_branch
      %257 = sbr.rel (0) target = $region45
    $region44: #{tpu_custom_call.1} parent=1 // pred_region
      %s259 = ssub.s32 256, 256
      %260 = vsyncadd [#allocation10], %s259
      %s261 = sshll.u32 [#allocation9], 4
      %s262 = int_to_ptr.vmem [resolvable:$true] %s261
      %267 = dma.vmem_to_hbm [thread:$0]  %s262, 256, %s9, [#allocation10], 128, 128, 8
    $region45: #{tpu_custom_call.1} parent=1 // pred_fallthru
      _
    // Predicated region
    $region46: #{tpu_custom_call.1} parent=1 // pred_check
      _
    $region47: #{tpu_custom_call.1} parent=1 // pred_check_branch
      %269 = sbr.rel (0) target = $region49
    $region48: #{tpu_custom_call.1} parent=1 // pred_region
      %270 = dma.done [#allocation4], 256
    $region49: #{tpu_custom_call.1} parent=1 // pred_fallthru
      _
    // Predicated region
    $region50: #{tpu_custom_call.1} parent=1 // pred_check
      _
    $region51: #{tpu_custom_call.1} parent=1 // pred_check_branch
      %272 = sbr.rel (0) target = $region53
    $region52: #{tpu_custom_call.1} parent=1 // pred_region
      %273 = dma.done [#allocation7], 256
    $region53: #{tpu_custom_call.1} parent=1 // pred_fallthru
      _
    // Predicated region
    $region54: #{tpu_custom_call.1} parent=1 // pred_check
      _
    $region55: #{tpu_custom_call.1} parent=1 // pred_check_branch
      %275 = sbr.rel (0) target = $region57
    $region56: #{tpu_custom_call.1} parent=1 // pred_region
      %276 = dma.done [#allocation7], 256
    $region57: #{tpu_custom_call.1} parent=1 // pred_fallthru
      _
    // Predicated region
    $region58: #{tpu_custom_call.1} parent=1 // pred_check
      _
    $region59: #{tpu_custom_call.1} parent=1 // pred_check_branch
      %278 = sbr.rel (0) target = $region61
    $region60: #{tpu_custom_call.1} parent=1 // pred_region
      %279 = dma.done [#allocation10], 256
    $region61: #{tpu_custom_call.1} parent=1 // pred_fallthru
      _
    %280 = vsyncpa [#allocation3], 1
    %281 = vsyncpa [#allocation4], 1
    %282 = vsyncpa [#allocation7], 1
    %283 = vsyncpa [#allocation10], 1

</llo_original>
